<compile_context>
chip_gen: v7x
topology: tpu7x:2x2x1
jax: 0.10.0
libtpu: 0.0.40
codegen_flags: <defaults>
</compile_context>

<pallas_src>
import functools

import jax
import jax.numpy as jnp
from jax.experimental import pallas as pl
from jax.experimental.pallas import tpu as pltpu

EPSILON = 1e-8
CLIP_THRESHOLD = 10.0
LANE = 128
TARGET_BLOCK_BYTES = 4 * 1024 * 1024   # ~4 MiB x blocks


def _round_up(v, m):
    return ((v + m - 1) // m) * m


def _vmem_params(block_bytes, semantics):
    """Explicit scoped-VMEM budget: 2x in + 2x out double buffers plus a few
    block-sized temporaries; clamped under v7x's 64 MiB physical VMEM."""
    limit = 8 * block_bytes + (4 << 20)
    limit = int(min(max(limit, 16 << 20), 56 << 20))
    return pltpu.CompilerParams(dimension_semantics=semantics,
                                vmem_limit_bytes=limit)


def _choose_tile_d_single(n, d, target_bytes):
    """Feature-tile width for the single-pass training kernel ((N, tile_d)
    blocks): multiple of 128 lanes, 4*N*tile_d <= target_bytes, and >= 2 grid
    steps whenever D allows it (keeps both v7x TensorCores busy)."""
    if d <= LANE:
        return d
    d_lane = _round_up(d, LANE)
    cols = (target_bytes // (4 * max(n, 1))) // LANE * LANE
    cols = max(cols, LANE)
    if d_lane >= 2 * LANE:
        cols = min(cols, _round_up(d_lane // 2, LANE))
    return min(cols, d_lane)


def _choose_tile_d_2d(d, target_bytes):
    """Feature-tile width for the 2-D (N, D) grids (eval / two-pass)."""
    if d <= LANE:
        return d
    d_lane = _round_up(d, LANE)
    cols = min(d_lane, 4 * LANE)
    if d_lane >= 2 * LANE:
        cols = min(cols, _round_up(d_lane // 2, LANE))
    return cols


def _choose_tile_n(n, tile_d, target_bytes):
    """Batch-tile height: multiple of 8 sublanes (or the full batch) such that
    4*tile_n*tile_d <= target_bytes."""
    if n <= 8:
        return n
    rows = (target_bytes // (4 * tile_d)) // 8 * 8
    rows = max(rows, 8)
    return n if rows >= n else rows


# ----------------------------------------------------------------------------
# Kernels
# ----------------------------------------------------------------------------
def _approx_reciprocal(v):
    # EUP reciprocal (otherwise-idle slot) + one Newton-Raphson step on the
    # (1, tile_d) row restores full f32 accuracy at negligible VALU cost.
    r = pl.reciprocal(v, approx=True)
    return r * (2.0 - v * r)


def _train_kernel(size_ref, x_ref, mean_ref, var_ref,
                  y_ref, new_mean_ref, new_var_ref,
                  *, epsilon, clip_threshold):
    """Single pass over one (N, tile_d) feature slab: merge batch stats into
    the running stats and normalize with the *updated* stats."""
    x = x_ref[...]                                         # (N, tile_d)
    batch_size = jnp.float32(x.shape[0])

    batch_mean = jnp.mean(x, axis=0, keepdims=True)        # (1, tile_d)
    diff = x - batch_mean                                   # reused below
    batch_var = jnp.sum(diff * diff, axis=0, keepdims=True) / (batch_size - 1.0)

    rm = mean_ref[...]
    rv = var_ref[...]
    cur = size_ref[0, 0]

    delta = batch_mean - rm
    total = cur + batch_size
    moment = (rv * cur + batch_var * batch_size
              + (cur * batch_size / total) * delta * delta)
    new_mean = rm + (batch_size / total) * delta
    new_var = moment / (total - 1.0)

    new_mean_ref[...] = new_mean
    new_var_ref[...] = new_var

    inv = _approx_reciprocal(jnp.sqrt(new_var) + epsilon)
    # x - new_mean == diff + (batch_mean - new_mean): reuse diff.
    y = (diff + (batch_mean - new_mean)) * inv
    y_ref[...] = jnp.clip(y, -clip_threshold, clip_threshold)


def _stats_kernel(x_ref, sum_ref, sumsq_ref, *, n_rows):
    """Pass 1 of the large-N path: per-feature sum / sum-of-squares,
    accumulated across the (arbitrary) batch-tile grid axis."""
    i_n = pl.program_id(1)
    tile_n = x_ref.shape[0]

    @pl.when(i_n == 0)
    def _():
        sum_ref[...] = jnp.zeros_like(sum_ref)
        sumsq_ref[...] = jnp.zeros_like(sumsq_ref)

    x = x_ref[...]
    if n_rows % tile_n != 0:
        # Mask padded rows of the ragged last batch tile (contents are
        # unspecified); jnp.where keeps NaN/Inf garbage from propagating.
        row = jax.lax.broadcasted_iota(jnp.int32, x.shape, 0) + i_n * tile_n
        x = jnp.where(row < n_rows, x, 0.0)
    sum_ref[...] = sum_ref[...] + jnp.sum(x, axis=0, keepdims=True)
    sumsq_ref[...] = sumsq_ref[...] + jnp.sum(x * x, axis=0, keepdims=True)


def _normalize_kernel(x_ref, mean_ref, var_ref, y_ref,
                      *, epsilon, clip_threshold):
    """Normalize one (tile_n, tile_d) block with fixed stats (eval / pass 2)."""
    inv = _approx_reciprocal(jnp.sqrt(var_ref[...]) + epsilon)
    y = (x_ref[...] - mean_ref[...]) * inv
    y_ref[...] = jnp.clip(y, -clip_threshold, clip_threshold)


# ----------------------------------------------------------------------------
# pallas_call wrappers
# ----------------------------------------------------------------------------
def _normalize(x, mean2d, var2d, tile_n, tile_d):
    n, d = x.shape
    grid = (pl.cdiv(n, tile_n), pl.cdiv(d, tile_d))
    kernel = functools.partial(_normalize_kernel, epsilon=EPSILON,
                               clip_threshold=CLIP_THRESHOLD)
    return pl.pallas_call(
        kernel,
        grid=grid,
        out_shape=jax.ShapeDtypeStruct((n, d), jnp.float32),
        in_specs=[pl.BlockSpec((tile_n, tile_d), lambda i, j: (i, j)),
                  pl.BlockSpec((1, tile_d), lambda i, j: (0, j)),
                  pl.BlockSpec((1, tile_d), lambda i, j: (0, j))],
        out_specs=pl.BlockSpec((tile_n, tile_d), lambda i, j: (i, j)),
        compiler_params=_vmem_params(4 * tile_n * tile_d,
                                     ("parallel", "parallel")),
    )(x, mean2d, var2d)


def _column_sums(x, tile_n, tile_d):
    n, d = x.shape
    grid = (pl.cdiv(d, tile_d), pl.cdiv(n, tile_n))   # reduction axis last
    kernel = functools.partial(_stats_kernel, n_rows=n)
    s, ss = pl.pallas_call(
        kernel,
        grid=grid,
        out_shape=(jax.ShapeDtypeStruct((1, d), jnp.float32),
                   jax.ShapeDtypeStruct((1, d), jnp.float32)),
        in_specs=[pl.BlockSpec((tile_n, tile_d), lambda j, i: (i, j))],
        out_specs=(pl.BlockSpec((1, tile_d), lambda j, i: (0, j)),
                   pl.BlockSpec((1, tile_d), lambda j, i: (0, j))),
        compiler_params=_vmem_params(4 * tile_n * tile_d,
                                     ("parallel", "arbitrary")),
    )(x)
    return s[0], ss[0]


@functools.partial(jax.jit,
                   static_argnames=("training", "tile_d", "target_block_bytes"))
def running_standard_scaler(x, running_mean, running_var, current_size,
                            training=True, tile_d=None,
                            target_block_bytes=TARGET_BLOCK_BYTES):
    """x: (N, D) f32; running_mean/var: (D,) f32; current_size: () f32.

    Returns (y, new_mean, new_var, new_size). In eval mode the stats are
    returned unchanged.
    """
    n, d = x.shape
    x = x.astype(jnp.float32)
    rm = running_mean.astype(jnp.float32)
    rv = running_var.astype(jnp.float32)
    cs = current_size.astype(jnp.float32)
    mean2d = rm.reshape(1, d)
    var2d = rv.reshape(1, d)

    if not training:
        td = tile_d if tile_d is not None else _choose_tile_d_2d(
            d, target_block_bytes)
        tn = _choose_tile_n(n, td, target_block_bytes)
        y = _normalize(x, mean2d, var2d, tn, td)
        return y, running_mean, running_var, current_size

    batch_size = jnp.float32(n)
    new_size = (cs + batch_size).reshape(())

    min_tile_d = d if d <= LANE else LANE
    probe_tile = tile_d if tile_d is not None else min_tile_d
    single_pass = 4 * n * probe_tile <= target_block_bytes

    if single_pass:
        td = tile_d if tile_d is not None else _choose_tile_d_single(
            n, d, target_block_bytes)
        size2d = cs.reshape(1, 1)
        kernel = functools.partial(_train_kernel, epsilon=EPSILON,
                                   clip_threshold=CLIP_THRESHOLD)
        x_spec = pl.BlockSpec((n, td), lambda j: (0, j))
        row_spec = pl.BlockSpec((1, td), lambda j: (0, j))
        size_spec = pl.BlockSpec((1, 1), lambda j: (0, 0),
                                 memory_space=pltpu.SMEM)
        y, new_mean2d, new_var2d = pl.pallas_call(
            kernel,
            grid=(pl.cdiv(d, td),),
            out_shape=(jax.ShapeDtypeStruct((n, d), jnp.float32),
                       jax.ShapeDtypeStruct((1, d), jnp.float32),
                       jax.ShapeDtypeStruct((1, d), jnp.float32)),
            in_specs=[size_spec, x_spec, row_spec, row_spec],
            out_specs=(x_spec, row_spec, row_spec),
            # In-place running-stats update (PyTorch buffer semantics).
            input_output_aliases={2: 1, 3: 2},
            compiler_params=_vmem_params(4 * n * td, ("parallel",)),
        )(size2d, x, mean2d, var2d)
        return y, new_mean2d.reshape((d,)), new_var2d.reshape((d,)), new_size

    # Large-N two-pass path: (N, 128) column slabs no longer fit the block
    # budget.  Accumulate per-feature sums first, merge the tiny (D,) stats
    # in plain JAX (negligible HBM traffic), then re-stream x to normalize.
    td = tile_d if tile_d is not None else _choose_tile_d_2d(
        d, target_block_bytes)
    tn = _choose_tile_n(n, td, target_block_bytes)
    s, ss = _column_sums(x, tn, td)
    batch_mean = s / batch_size
    batch_var = (ss - batch_size * batch_mean * batch_mean) / (batch_size - 1.0)

    delta = batch_mean - rm
    total = cs + batch_size
    moment = (rv * cs + batch_var * batch_size
              + (cs * batch_size / total) * delta * delta)
    new_mean = rm + (batch_size / total) * delta
    new_var = moment / (total - 1.0)

    y = _normalize(x, new_mean.reshape(1, d), new_var.reshape(1, d), tn, td)
    return y, new_mean, new_var, new_size


# ----------------------------------------------------------------------------
# Pure-JAX reference (mirrors the PyTorch forward)
# ----------------------------------------------------------------------------
def _reference(x, running_mean, running_var, current_size, training=True):
    x = x.astype(jnp.float32)
    if training:
        batch_size = float(x.shape[0])
        batch_mean = jnp.mean(x, axis=0)
        batch_var = jnp.var(x, axis=0, ddof=1)
        delta = batch_mean - running_mean
        total = current_size + batch_size
        moment = (running_var * current_size + batch_var * batch_size
                  + current_size * batch_size / total * delta ** 2)
        running_mean = running_mean + batch_size / total * delta
        running_var = moment / (total - 1.0)
        current_size = total
    y = (x - running_mean) / (jnp.sqrt(running_var) + EPSILON)
    y = jnp.clip(y, -CLIP_THRESHOLD, CLIP_THRESHOLD)
    return y, running_mean, running_var, current_size


# ----------------------------------------------------------------------------
if __name__ == "__main__":
    def _check(a, b, atol, msg):
        assert jnp.allclose(a, b, atol=atol, rtol=1e-4), msg

    # --- case 1: narrow feature dim (D < 128), single tile, single pass -----
    key = jax.random.PRNGKey(0)
    N, D = 8, 32
    x = jax.random.normal(key, (N, D), dtype=jnp.float32) * 3.0 + 1.5
    rm0 = jnp.zeros((D,), jnp.float32)
    rv0 = jnp.ones((D,), jnp.float32)
    cs0 = jnp.ones((), jnp.float32)

    y, nm, nv, ns = running_standard_scaler(x, rm0, rv0, cs0, training=True)
    jax.block_until_ready((y, nm, nv, ns))
    ry, rrm, rrv, rcs = _reference(x, rm0, rv0, cs0, training=True)
    _check(y, ry, 5e-4, "case1 y")
    _check(nm, rrm, 1e-5, "case1 mean")
    _check(nv, rrv, 1e-5, "case1 var")
    _check(ns, rcs, 1e-5, "case1 size")

    ye, _, _, _ = running_standard_scaler(x, nm, nv, ns, training=False)
    jax.block_until_ready(ye)
    rye, _, _, _ = _reference(x, rrm, rrv, rcs, training=False)
    _check(ye, rye, 5e-4, "case1 eval y")

    # --- case 2: ragged multi-tile feature grid (D=300, tile_d=128 -> 3
    # tiles, last partial): masked writeback with NO wrapper padding/slicing.
    key2 = jax.random.PRNGKey(0)
    N2, D2 = 16, 300
    x2 = jax.random.normal(key2, (N2, D2), dtype=jnp.float32) * 0.7 - 2.0
    rm2 = jnp.linspace(-1.0, 1.0, D2, dtype=jnp.float32)
    rv2 = jnp.linspace(0.5, 2.0, D2, dtype=jnp.float32)
    cs2 = jnp.asarray(5.0, jnp.float32)

    y2, nm2, nv2, ns2 = running_standard_scaler(x2, rm2, rv2, cs2,
                                                training=True, tile_d=128)
    jax.block_until_ready((y2, nm2, nv2, ns2))
    ry2, rrm2, rrv2, rcs2 = _reference(x2, rm2, rv2, cs2, training=True)
    _check(y2, ry2, 5e-4, "case2 y")
    _check(nm2, rrm2, 1e-5, "case2 mean")
    _check(nv2, rrv2, 1e-4, "case2 var")
    _check(ns2, rcs2, 1e-5, "case2 size")

    y2e, _, _, _ = running_standard_scaler(x2, nm2, nv2, ns2, training=False,
                                           tile_d=128)
    jax.block_until_ready(y2e)
    ry2e, _, _, _ = _reference(x2, rrm2, rrv2, rcs2, training=False)
    _check(y2e, ry2e, 5e-4, "case2 eval y")

    # --- case 3: large-N two-pass training path (forced via a tiny block
    # budget) + 2-D eval grid with a ragged last batch tile.
    key3 = jax.random.PRNGKey(0)
    N3, D3 = 40, 256
    x3 = jax.random.normal(key3, (N3, D3), dtype=jnp.float32) * 1.3 + 0.25
    rm3 = jnp.linspace(0.0, 0.5, D3, dtype=jnp.float32)
    rv3 = jnp.linspace(0.8, 1.6, D3, dtype=jnp.float32)
    cs3 = jnp.asarray(3.0, jnp.float32)

    y3, nm3, nv3, ns3 = running_standard_scaler(
        x3, rm3, rv3, cs3, training=True, target_block_bytes=8192)
    jax.block_until_ready((y3, nm3, nv3, ns3))
    ry3, rrm3, rrv3, rcs3 = _reference(x3, rm3, rv3, cs3, training=True)
    _check(y3, ry3, 5e-4, "case3 y")
    _check(nm3, rrm3, 1e-5, "case3 mean")
    _check(nv3, rrv3, 1e-4, "case3 var")
    _check(ns3, rcs3, 1e-5, "case3 size")

    y3e, _, _, _ = running_standard_scaler(x3, nm3, nv3, ns3, training=False,
                                           target_block_bytes=8192)
    jax.block_until_ready(y3e)
    ry3e, _, _, _ = _reference(x3, rrm3, rrv3, rcs3, training=False)
    _check(y3e, ry3e, 5e-4, "case3 eval y")

    print("KERNEL_OK")
</pallas_src>

<mosaic_0001>
module attributes {stable_mosaic.version = 11 : i64} {
  func.func @_train_kernel(%arg0: i32, %arg1: memref<1x1xf32, #tpu.memory_space<smem>>, %arg2: memref<8x32xf32, #tpu.memory_space<vmem>>, %arg3: memref<1x32xf32, #tpu.memory_space<vmem>>, %arg4: memref<1x32xf32, #tpu.memory_space<vmem>>, %arg5: memref<8x32xf32, #tpu.memory_space<vmem>>, %arg6: memref<1x32xf32, #tpu.memory_space<vmem>>, %arg7: memref<1x32xf32, #tpu.memory_space<vmem>>) attributes {dimension_semantics = [#tpu.dimension_semantics<parallel>], iteration_bounds = array<i64: 1>, scalar_prefetch = 0 : i64, scratch_operands = 0 : i64, tpu.core_type = #tpu.core_type<tc>, window_params = [{transform_indices = @transform_0, window_bounds = array<i64: 1, 1>}, {transform_indices = @transform_1, window_bounds = array<i64: 8, 32>}, {transform_indices = @transform_2, window_bounds = array<i64: 1, 32>}, {transform_indices = @transform_3, window_bounds = array<i64: 1, 32>}, {transform_indices = @transform_4, window_bounds = array<i64: 8, 32>}, {transform_indices = @transform_5, window_bounds = array<i64: 1, 32>}, {transform_indices = @transform_6, window_bounds = array<i64: 1, 32>}]} {
    %c0 = arith.constant 0 : index
    %c0_0 = arith.constant 0 : index
    %0 = vector.load %arg2[%c0, %c0_0] : memref<8x32xf32, #tpu.memory_space<vmem>>, vector<8x32xf32>
    %cst = arith.constant dense<0.000000e+00> : vector<32xf32>
    %1 = vector.multi_reduction <add>, %0, %cst [0] : vector<8x32xf32> to vector<32xf32>
    %2 = vector.shape_cast %1 : vector<32xf32> to vector<1x32xf32>
    %cst_1 = arith.constant 8.000000e+00 : f32
    %3 = vector.broadcast %cst_1 : f32 to vector<1x32xf32>
    %4 = arith.divf %2, %3 : vector<1x32xf32>
    %5 = vector.broadcast %4 : vector<1x32xf32> to vector<8x32xf32>
    %6 = arith.subf %0, %5 : vector<8x32xf32>
    %7 = arith.mulf %6, %6 : vector<8x32xf32>
    %cst_2 = arith.constant dense<0.000000e+00> : vector<32xf32>
    %8 = vector.multi_reduction <add>, %7, %cst_2 [0] : vector<8x32xf32> to vector<32xf32>
    %9 = vector.shape_cast %8 : vector<32xf32> to vector<1x32xf32>
    %cst_3 = arith.constant 8.000000e+00 : f32
    %cst_4 = arith.constant 1.000000e+00 : f32
    %10 = arith.subf %cst_3, %cst_4 : f32
    %11 = vector.broadcast %10 : f32 to vector<1x32xf32>
    %12 = arith.divf %9, %11 : vector<1x32xf32>
    %c0_5 = arith.constant 0 : index
    %c0_6 = arith.constant 0 : index
    %13 = vector.load %arg3[%c0_5, %c0_6] : memref<1x32xf32, #tpu.memory_space<vmem>>, vector<1x32xf32>
    %c0_7 = arith.constant 0 : index
    %c0_8 = arith.constant 0 : index
    %14 = vector.load %arg4[%c0_7, %c0_8] : memref<1x32xf32, #tpu.memory_space<vmem>>, vector<1x32xf32>
    %c0_9 = arith.constant 0 : index
    %c0_10 = arith.constant 0 : index
    %15 = memref.load %arg1[%c0_9, %c0_10] : memref<1x1xf32, #tpu.memory_space<smem>>
    %16 = arith.subf %4, %13 : vector<1x32xf32>
    %cst_11 = arith.constant 8.000000e+00 : f32
    %17 = arith.addf %15, %cst_11 : f32
    %18 = vector.broadcast %15 : f32 to vector<1x32xf32>
    %19 = arith.mulf %14, %18 : vector<1x32xf32>
    %cst_12 = arith.constant 8.000000e+00 : f32
    %20 = vector.broadcast %cst_12 : f32 to vector<1x32xf32>
    %21 = arith.mulf %12, %20 : vector<1x32xf32>
    %22 = arith.addf %19, %21 : vector<1x32xf32>
    %cst_13 = arith.constant 8.000000e+00 : f32
    %23 = arith.mulf %15, %cst_13 : f32
    %24 = arith.divf %23, %17 : f32
    %25 = vector.broadcast %24 : f32 to vector<1x32xf32>
    %26 = arith.mulf %25, %16 : vector<1x32xf32>
    %27 = arith.mulf %26, %16 : vector<1x32xf32>
    %28 = arith.addf %22, %27 : vector<1x32xf32>
    %cst_14 = arith.constant 8.000000e+00 : f32
    %29 = arith.divf %cst_14, %17 : f32
    %30 = vector.broadcast %29 : f32 to vector<1x32xf32>
    %31 = arith.mulf %30, %16 : vector<1x32xf32>
    %32 = arith.addf %13, %31 : vector<1x32xf32>
    %cst_15 = arith.constant 1.000000e+00 : f32
    %33 = arith.subf %17, %cst_15 : f32
    %34 = vector.broadcast %33 : f32 to vector<1x32xf32>
    %35 = arith.divf %28, %34 : vector<1x32xf32>
    %c0_16 = arith.constant 0 : index
    %c0_17 = arith.constant 0 : index
    %36 = vector.load %arg6[%c0_16, %c0_17] : memref<1x32xf32, #tpu.memory_space<vmem>>, vector<1x32xf32>
    tpu.vector_store %arg6[%c0_16, %c0_17], %32 {strides = array<i32>} : memref<1x32xf32, #tpu.memory_space<vmem>>, vector<1x32xf32>,
    %c0_18 = arith.constant 0 : index
    %c0_19 = arith.constant 0 : index
    %37 = vector.load %arg7[%c0_18, %c0_19] : memref<1x32xf32, #tpu.memory_space<vmem>>, vector<1x32xf32>
    tpu.vector_store %arg7[%c0_18, %c0_19], %35 {strides = array<i32>} : memref<1x32xf32, #tpu.memory_space<vmem>>, vector<1x32xf32>,
    %38 = math.sqrt %35 : vector<1x32xf32>
    %cst_20 = arith.constant 9.99999993E-9 : f32
    %39 = vector.broadcast %cst_20 : f32 to vector<1x32xf32>
    %40 = arith.addf %38, %39 : vector<1x32xf32>
    %41 = tpu.reciprocal %40 {approx = true} : vector<1x32xf32> -> vector<1x32xf32>
    %42 = arith.mulf %40, %41 : vector<1x32xf32>
    %cst_21 = arith.constant 2.000000e+00 : f32
    %43 = vector.broadcast %cst_21 : f32 to vector<1x32xf32>
    %44 = arith.subf %43, %42 : vector<1x32xf32>
    %45 = arith.mulf %41, %44 : vector<1x32xf32>
    %46 = arith.subf %4, %32 : vector<1x32xf32>
    %47 = vector.broadcast %46 : vector<1x32xf32> to vector<8x32xf32>
    %48 = arith.addf %6, %47 : vector<8x32xf32>
    %49 = vector.broadcast %45 : vector<1x32xf32> to vector<8x32xf32>
    %50 = arith.mulf %48, %49 : vector<8x32xf32>
    %cst_22 = arith.constant -1.000000e+01 : f32
    %cst_23 = arith.constant 1.000000e+01 : f32
    %51 = vector.broadcast %cst_22 : f32 to vector<8x32xf32>
    %52 = arith.maximumf %51, %50 : vector<8x32xf32>
    %53 = vector.broadcast %cst_23 : f32 to vector<8x32xf32>
    %54 = arith.minimumf %53, %52 : vector<8x32xf32>
    %c0_24 = arith.constant 0 : index
    %c0_25 = arith.constant 0 : index
    %55 = vector.load %arg5[%c0_24, %c0_25] : memref<8x32xf32, #tpu.memory_space<vmem>>, vector<8x32xf32>
    tpu.vector_store %arg5[%c0_24, %c0_25], %54 {strides = array<i32>} : memref<8x32xf32, #tpu.memory_space<vmem>>, vector<8x32xf32>,
    return
  }
  func.func @transform_0(%arg0: i32) -> (i32, i32) {
    %c0_i32 = arith.constant 0 : i32
    %c0_i32_0 = arith.constant 0 : i32
    %c0_i32_1 = arith.constant 0 : i32
    return %c0_i32, %c0_i32_0 : i32, i32
  }
  func.func @transform_1(%arg0: i32) -> (i32, i32) {
    %c0_i32 = arith.constant 0 : i32
    %c0_i32_0 = arith.constant 0 : i32
    return %c0_i32, %arg0 : i32, i32
  }
  func.func @transform_2(%arg0: i32) -> (i32, i32) {
    %c0_i32 = arith.constant 0 : i32
    %c0_i32_0 = arith.constant 0 : i32
    return %c0_i32, %arg0 : i32, i32
  }
  func.func @transform_3(%arg0: i32) -> (i32, i32) {
    %c0_i32 = arith.constant 0 : i32
    %c0_i32_0 = arith.constant 0 : i32
    return %c0_i32, %arg0 : i32, i32
  }
  func.func @transform_4(%arg0: i32) -> (i32, i32) {
    %c0_i32 = arith.constant 0 : i32
    %c0_i32_0 = arith.constant 0 : i32
    return %c0_i32, %arg0 : i32, i32
  }
  func.func @transform_5(%arg0: i32) -> (i32, i32) {
    %c0_i32 = arith.constant 0 : i32
    %c0_i32_0 = arith.constant 0 : i32
    return %c0_i32, %arg0 : i32, i32
  }
  func.func @transform_6(%arg0: i32) -> (i32, i32) {
    %c0_i32 = arith.constant 0 : i32
    %c0_i32_0 = arith.constant 0 : i32
    return %c0_i32, %arg0 : i32, i32
  }
}

</mosaic_0001>

<llo_original>
// kernel: running_standard_scaler.1
$region0: #{running_standard_scaler.1}
  #allocation0 [shape = 'u32[]', space=smem, size = 0x4, offset = 0x4, fixed_abs, tag = 'smem constant byte address 0x4 - core index']
  #allocation1 [shape = 'u32[144,128]{1,0:T(1,128)}', space=vmem, size = 0x12000, scoped, tag = 'internal scratch']
  #allocation2 [shape = 'f32[1,1]{1,0:T(1,128)S(6)}', space=smem, size = 0x200, scoped, tag = 'scoped memory for running_standard_scaler.1']
  %s0 = inlined_call_operand.<no memory space> [shape: f32[1,1], index: 0, kind: input, shape index: {}]
  %s1 = inlined_call_operand.vmem [shape: f32[8,32], index: 1, kind: input, shape index: {}]
  %s2 = inlined_call_operand.vmem [shape: f32[1,32], index: 2, kind: input, shape index: {}, may-alias: {2,5}]
  %s3 = inlined_call_operand.vmem [shape: f32[1,32], index: 3, kind: input, shape index: {}, may-alias: {3,6}]
  %s4 = inlined_call_operand.hbm [shape: f32[8,32], index: 4, kind: output, shape index: {0}]
  %s5 = inlined_call_operand.vmem [shape: f32[1,32], index: 5, kind: output, shape index: {1}, may-alias: {2,5}]
  %s6 = inlined_call_operand.vmem [shape: f32[1,32], index: 6, kind: output, shape index: {2}, may-alias: {3,6}]
  %7 = xla_tuple %s4, %s5, %s6
  %s8 = sld [smem:[#allocation0]]
  $region42: #{running_standard_scaler.1} parent=0
    _
  %s10 = ssub.s32 1, %s8
  %s11 = scalar_select 0, %s10, %s8
  %12 = sst [smem:[#allocation2]] %s0
  $region1: #{running_standard_scaler.1} parent=0
    #allocation3 [shape = 'u8[4096]{0}', space=vmem, size = 0x1000, scoped, tag = 'output window, operand 0, single buffered']
    #allocation4 [shape = 's32[1]{0}', space=sflag, size = 0x4, scoped, tag = 'scoped memory for running_standard_scaler.1']
    %13 = vsyncpa [#allocation4], 0
    // Predicated region
    $region2: #{running_standard_scaler.1} parent=1 // pred_check
      _
    $region3: #{running_standard_scaler.1} parent=1 // pred_check_branch
      %15 = sbr.rel (0) target = $region5
    $region4: #{running_standard_scaler.1} parent=1 // pred_region
      _
    $region5: #{running_standard_scaler.1} parent=1 // pred_fallthru
      _
    // Predicated region
    $region6: #{running_standard_scaler.1} parent=1 // pred_check
      _
    $region7: #{running_standard_scaler.1} parent=1 // pred_check_branch
      %17 = sbr.rel (0) target = $region9
    $region8: #{running_standard_scaler.1} parent=1 // pred_region
      _
    $region9: #{running_standard_scaler.1} parent=1 // pred_fallthru
      _
    // Predicated region
    $region10: #{running_standard_scaler.1} parent=1 // pred_check
      _
    $region11: #{running_standard_scaler.1} parent=1 // pred_check_branch
      %19 = sbr.rel (0) target = $region13
    $region12: #{running_standard_scaler.1} parent=1 // pred_region
      _
    $region13: #{running_standard_scaler.1} parent=1 // pred_fallthru
      _
    // Predicated region
    $region14: #{running_standard_scaler.1} parent=1 // pred_check
      _
    $region15: #{running_standard_scaler.1} parent=1 // pred_check_branch
      %21 = sbr.rel (0) target = $region17
    $region16: #{running_standard_scaler.1} parent=1 // pred_region
      _
    $region17: #{running_standard_scaler.1} parent=1 // pred_fallthru
      _
    %v22 = vld [vmem:[%s1] sm:$0xff]
    %vm23 = vcmask 261120
    %v24 = vsel %vm23, %v22, 0.0
    %v25 = vrot.slane %v24, 4
    %v26 = vadd.f32 %v24, %v25
    %v27 = vrot.slane %v26, 2
    %v28 = vadd.f32 %v26, %v27
    %v29 = vrot.slane %v28, 1
    %v30 = vadd.f32 %v28, %v29
    %v31 = vrcp.pop 8.0
    %v32 = vmul.f32 %v30, %v31
    %v33 = vsub.f32 %v22, %v32
    %v34 = vmul.f32 %v33, %v33
    %v35 = vsel %vm23, %v34, 0.0
    %v36 = vrot.slane %v35, 4
    %v37 = vadd.f32 %v35, %v36
    %v38 = vrot.slane %v37, 2
    %v39 = vadd.f32 %v37, %v38
    %v40 = vrot.slane %v39, 1
    %v41 = vadd.f32 %v39, %v40
    %v42 = vrcp.pop 7.0
    %v43 = vmul.f32 %v41, %v42
    %v44 = vld [vmem:[%s2] sm:$0x1]
    %v45 = vld [vmem:[%s3] sm:$0x1]
    %s46 = sld [smem:[#allocation2]]
    %v47 = vsub.f32 %v32, %v44
    %s48 = sadd.f32 %s46, 8.0
    %v49 = vstv %s46
    %v50 = vmul.f32 %v45, %v49
    %v51 = vmul.f32 %v43, 8.0
    %v52 = vadd.f32 %v50, %v51
    %s53 = smul.f32 %s46, 8.0
    %v54 = vstv %s48
    %v55 = vrcp.pop %v54
    %s56 = vtos %v55
    %s57 = smul.f32 %s53, %s56
    %v58 = vstv %s57
    %v59 = vmul.f32 %v58, %v47
    %v60 = vmul.f32 %v59, %v47
    %v61 = vadd.f32 %v52, %v60
    %v62 = vstv %s48
    %v63 = vrcp.pop %v62
    %s64 = vtos %v63
    %s65 = smul.f32 8.0, %s64
    %v66 = vstv %s65
    %v67 = vmul.f32 %v66, %v47
    %v68 = vadd.f32 %v44, %v67
    %s69 = ssub.f32 %s48, 1.0
    %v70 = vstv %s69
    %v71 = vrcp.pop %v70
    %v72 = vmul.f32 %v61, %v71
    %vm73 = vcmask 253952
    %74 = vst.msk [vmem:[%s5] sm:$0x1] %vm73, %v68
    %75 = vst.msk [vmem:[%s6] sm:$0x1] %vm73, %v72
    %v76 = vrsqrt.pop %v72
    %v77 = vmul.f32 %v72, %v76
    %vm78 = vcmp.eq.f32.partialorder %v72, inf
    %v79 = vsel %vm78, %v72, %v77
    %vm80 = vcmp.eq.f32.partialorder %v72, 0.0
    %v81 = vand.u32 %v72, 2147483648
    %v82 = vsel %vm80, %v81, %v79
    %v83 = vadd.f32 %v82, 1e-08
    %v84 = vrcp.pop %v83
    %v85 = vmul.f32 %v83, %v84
    %v86 = vsub.f32 2.0, %v85
    %v87 = vmul.f32 %v84, %v86
    %v88 = vsub.f32 %v32, %v68
    %v89 = vlaneseq
    %v90 = vshrl.u32 %v89, 7
    %v91 = vsub.s32 0, %v90
    %v92 = vrot.slane %v88, %v91
    %v93 = vadd.f32 %v33, %v92
    %v95 = vlaneseq
    %v96 = vshrl.u32 %v95, 7
    %v97 = vsub.s32 0, %v96
    %v98 = vrot.slane %v87, %v97
    %v100 = vmul.f32 %v93, %v98
    %v101 = vmax.f32 %v100, -10.0
    %v102 = vmin.f32 %v101, 10.0
    %103 = vst.msk [vmem:[#allocation3] sm:$0xff] %vm23, %v102
    // Predicated region
    $region18: #{running_standard_scaler.1} parent=1 // pred_check
      _
    $region19: #{running_standard_scaler.1} parent=1 // pred_check_branch
      %105 = sbr.rel (0) target = $region21
    $region20: #{running_standard_scaler.1} parent=1 // pred_region
      %s107 = ssub.s32 128, 128
      %108 = vsyncadd [#allocation4], %s107
      %s110 = sshll.u32 [#allocation3], 4
      %s111 = int_to_ptr.vmem [resolvable:$true] %s110
      %113 = dma.vmem_to_hbm [thread:$0]  %s111, 128, %s4, [#allocation4]
    $region21: #{running_standard_scaler.1} parent=1 // pred_fallthru
      _
    // Predicated region
    $region22: #{running_standard_scaler.1} parent=1 // pred_check
      _
    $region23: #{running_standard_scaler.1} parent=1 // pred_check_branch
      %115 = sbr.rel (0) target = $region25
    $region24: #{running_standard_scaler.1} parent=1 // pred_region
      _
    $region25: #{running_standard_scaler.1} parent=1 // pred_fallthru
      _
    // Predicated region
    $region26: #{running_standard_scaler.1} parent=1 // pred_check
      _
    $region27: #{running_standard_scaler.1} parent=1 // pred_check_branch
      %117 = sbr.rel (0) target = $region29
    $region28: #{running_standard_scaler.1} parent=1 // pred_region
      _
    $region29: #{running_standard_scaler.1} parent=1 // pred_fallthru
      _
    // Predicated region
    $region30: #{running_standard_scaler.1} parent=1 // pred_check
      _
    $region31: #{running_standard_scaler.1} parent=1 // pred_check_branch
      %119 = sbr.rel (0) target = $region33
    $region32: #{running_standard_scaler.1} parent=1 // pred_region
      %120 = dma.done [#allocation4], 128
    $region33: #{running_standard_scaler.1} parent=1 // pred_fallthru
      _
    // Predicated region
    $region34: #{running_standard_scaler.1} parent=1 // pred_check
      _
    $region35: #{running_standard_scaler.1} parent=1 // pred_check_branch
      %122 = sbr.rel (0) target = $region37
    $region36: #{running_standard_scaler.1} parent=1 // pred_region
      _
    $region37: #{running_standard_scaler.1} parent=1 // pred_fallthru
      _
    // Predicated region
    $region38: #{running_standard_scaler.1} parent=1 // pred_check
      _
    $region39: #{running_standard_scaler.1} parent=1 // pred_check_branch
      %124 = sbr.rel (0) target = $region41
    $region40: #{running_standard_scaler.1} parent=1 // pred_region
      _
    $region41: #{running_standard_scaler.1} parent=1 // pred_fallthru
      _
    %125 = vsyncpa [#allocation4], 1

</llo_original>
